<compile_context>
chip_gen: v7x
topology: tpu7x:2x2x1
jax: 0.10.0
libtpu: 0.0.40
codegen_flags: <defaults>
</compile_context>

<pallas_src>
import functools

import jax
import jax.numpy as jnp
from jax.experimental import pallas as pl
from jax.experimental.pallas import tpu as pltpu


def _dpconv_kernel(x_ref, wf_ref, bias_ref, o_ref, *, pad, L_valid):
    """One batch-tile per grid step.

    x_ref    : (Bt, C_in, Lb)      input block, native dtype (Lb == L_out)
    wf_ref   : (k, C_out, C_in)    folded weights  wf[j] = wp * wd[:, j]
    bias_ref : (C_out, 1)          fused bias      wp @ bd + bp   (f32)
    o_ref    : (Bt, C_out, Lb)
    """
    bt, _, l_blk = x_ref.shape
    k = wf_ref.shape[0]

    x = x_ref[...]                                    # native dtype, no upcast
    bias = bias_ref[...].astype(jnp.float32)          # (C_out, 1)

    lane = None
    if k > 1:
        # hoisted once: lane index for edge masking (zero padding semantics)
        lane = jax.lax.broadcasted_iota(jnp.int32, (1, 1, l_blk), 2)

    accs = [None] * bt
    for j in range(k):                                # k is small -> static unroll
        s = j - pad                                   # tap j reads x[..., t + s]
        if s == 0:
            xs = x
        else:
            # roll uses the XLU slot (cheap vs VALU); mask zero-fills the halo.
            xs = pltpu.roll(x, shift=(-s) % l_blk, axis=2)
            valid = (lane + s >= 0) & (lane + s < L_valid)
            xs = jnp.where(valid, xs, jnp.zeros((), x.dtype))
        wj = wf_ref[j]                                # (C_out, C_in) native dtype
        for b in range(bt):                           # static unroll over batch tile
            term = jnp.dot(wj, xs[b], preferred_element_type=jnp.float32)
            accs[b] = term if accs[b] is None else accs[b] + term

    for b in range(bt):
        o_ref[b] = (accs[b] + bias).astype(o_ref.dtype)


def _pick_batch_tile(B, C_in, C_out, L_out, itemsize):
    """Batch-tile size: amortize per-step overhead, stay inside a conservative
    VMEM budget (v7x has only 64 MiB physical / 32 MiB scoped), and keep the
    parallel grid >= 2 so both v7x TensorCores get work."""
    # double-buffered in/out blocks + f32 accumulator + one shifted temporary
    per_b = 2 * (C_in + C_out) * L_out * itemsize + (C_in + C_out) * L_out * 4
    budget = 8 * 1024 * 1024
    cap = max(1, budget // max(per_b, 1))
    if B >= 2:
        cap = min(cap, B // 2)
    cap = max(1, min(cap, B))
    for c in range(cap, 0, -1):
        if B % c == 0:
            return c
    return 1


def depth_pointwise_conv1d(x, wp, bp, *, k, wd=None, bd=None):
    """x: (B, C_in, L) -> (B, C_out, L_out), matching the PyTorch module.

    wp: (C_out, C_in) pointwise weight, bp: (C_out,) pointwise bias.
    For k != 1: wd: (C_in, k) depthwise weight, bd: (C_in,) depthwise bias.
    """
    B, C_in, L = x.shape
    C_out = wp.shape[0]
    pad = k // 2
    L_out = L if k == 1 else L + 2 * pad - k + 1

    # ---- fold depthwise into pointwise (parameter-sized ops, negligible) ----
    if k == 1:
        wf = wp[None, :, :]                                         # (1, C_out, C_in)
        bias = bp.reshape(C_out, 1).astype(jnp.float32)
    else:
        wf = wp[None, :, :] * jnp.transpose(wd)[:, None, :]         # (k, C_out, C_in)
        bias = (wp.astype(jnp.float32) @ bd.reshape(C_in, 1).astype(jnp.float32)
                + bp.reshape(C_out, 1).astype(jnp.float32))
    wf = wf.astype(x.dtype)   # keep native dtype end-to-end into the MXU

    # Even k produces one extra output column (PyTorch padding=k//2). Right-pad a
    # single zero column so in-kernel lengths match; odd k / k==1 need NO pad at all.
    if L_out > L:
        x = jnp.pad(x, ((0, 0), (0, 0), (0, L_out - L)))

    bt = _pick_batch_tile(B, C_in, C_out, L_out, jnp.dtype(x.dtype).itemsize)
    grid_b = B // bt

    kernel = functools.partial(_dpconv_kernel, pad=pad, L_valid=L)

    itemsize = jnp.dtype(x.dtype).itemsize
    cost = pl.CostEstimate(
        flops=2 * B * k * C_out * C_in * L_out,
        transcendentals=0,
        bytes_accessed=int(x.size * itemsize + wf.size * itemsize
                           + bias.size * 4 + B * C_out * L_out * itemsize),
    )

    return pl.pallas_call(
        kernel,
        out_shape=jax.ShapeDtypeStruct((B, C_out, L_out), x.dtype),
        grid_spec=pltpu.PrefetchScalarGridSpec(
            num_scalar_prefetch=0,
            grid=(grid_b,),
            in_specs=[
                pl.BlockSpec((bt, C_in, L_out), lambda b: (b, 0, 0)),
                pl.BlockSpec((k, C_out, C_in), lambda b: (0, 0, 0)),
                pl.BlockSpec((C_out, 1), lambda b: (0, 0)),
            ],
            out_specs=pl.BlockSpec((bt, C_out, L_out), lambda b: (b, 0, 0)),
        ),
        compiler_params=pltpu.CompilerParams(
            dimension_semantics=("parallel",),
            vmem_limit_bytes=32 * 1024 * 1024,
        ),
        cost_estimate=cost,
    )(x, wf, bias)
    # TODO(synk): for very long L with B too small to tile, add an L-halo tiled
    # path (manual DMA of tile_L + k - 1 columns) so a single row never exceeds VMEM.


def _reference(x, wd, bd, wp, bp, *, k):
    """Pure-JAX reference mirroring nn.Conv1d semantics."""
    B, C_in, L = x.shape
    if k != 1:
        depth = jax.lax.conv_general_dilated(
            x, wd[:, None, :],
            window_strides=(1,), padding=[(k // 2, k // 2)],
            dimension_numbers=("NCH", "OIH", "NCH"),
            feature_group_count=C_in,
        ) + bd[None, :, None]
    else:
        depth = x
    return jnp.einsum("oc,bcl->bol", wp, depth) + bp[None, :, None]


if __name__ == "__main__":
    # small shapes consistent with the module: batch=2, in_ch=4, out_ch=8, L=16, k=3
    B, C_in, C_out, L, k = 2, 4, 8, 16, 3

    key = jax.random.PRNGKey(0)
    kx, kwd, kbd, kwp, kbp = jax.random.split(key, 5)

    x = jax.random.normal(kx, (B, C_in, L), dtype=jnp.float32)

    # Conv1d-style uniform init; shapes from __init__:
    #   depth_conv.weight (C_in,1,k) -> (C_in,k); depth_conv.bias (C_in,)
    #   pointwise_conv.weight (C_out,C_in,1) -> (C_out,C_in); pointwise_conv.bias (C_out,)
    bound_d = 1.0 / (1 * k) ** 0.5
    bound_p = 1.0 / (C_in * 1) ** 0.5
    wd = jax.random.uniform(kwd, (C_in, k), jnp.float32, -bound_d, bound_d)
    bd = jax.random.uniform(kbd, (C_in,), jnp.float32, -bound_d, bound_d)
    wp = jax.random.uniform(kwp, (C_out, C_in), jnp.float32, -bound_p, bound_p)
    bp = jax.random.uniform(kbp, (C_out,), jnp.float32, -bound_p, bound_p)

    # k = 3 path (depthwise + pointwise)
    out = depth_pointwise_conv1d(x, wp, bp, k=k, wd=wd, bd=bd)
    out = jax.block_until_ready(out)
    ref = _reference(x, wd, bd, wp, bp, k=k)
    assert out.shape == ref.shape, (out.shape, ref.shape)
    assert jnp.allclose(out, ref, atol=1e-5, rtol=1e-5), "mismatch vs reference (k=3)"

    # k = 1 path (Identity depthwise)
    out1 = depth_pointwise_conv1d(x, wp, bp, k=1)
    out1 = jax.block_until_ready(out1)
    ref1 = _reference(x, wd, bd, wp, bp, k=1)
    assert out1.shape == ref1.shape, (out1.shape, ref1.shape)
    assert jnp.allclose(out1, ref1, atol=1e-5, rtol=1e-5), "mismatch vs reference (k=1)"

    print("KERNEL_OK")
</pallas_src>

<mosaic_0001>
module attributes {stable_mosaic.version = 11 : i64} {
  func.func @_dpconv_kernel(%arg0: i32, %arg1: memref<1x4x16xf32, #tpu.memory_space<vmem>>, %arg2: memref<3x8x4xf32, #tpu.memory_space<vmem>>, %arg3: memref<8x1xf32, #tpu.memory_space<vmem>>, %arg4: memref<1x8x16xf32, #tpu.memory_space<vmem>>) attributes {dimension_semantics = [#tpu.dimension_semantics<parallel>], iteration_bounds = array<i64: 2>, scalar_prefetch = 0 : i64, scratch_operands = 0 : i64, tpu.core_type = #tpu.core_type<tc>, window_params = [{transform_indices = @transform_0, window_bounds = array<i64: 1, 4, 16>}, {pipeline_mode = #tpu.pipeline_mode<synchronous>, transform_indices = @transform_1, window_bounds = array<i64: 3, 8, 4>}, {pipeline_mode = #tpu.pipeline_mode<synchronous>, transform_indices = @transform_2, window_bounds = array<i64: 8, 1>}, {transform_indices = @transform_3, window_bounds = array<i64: 1, 8, 16>}]} {
    %c0 = arith.constant 0 : index
    %c0_0 = arith.constant 0 : index
    %c0_1 = arith.constant 0 : index
    %0 = vector.load %arg1[%c0, %c0_0, %c0_1] : memref<1x4x16xf32, #tpu.memory_space<vmem>>, vector<1x4x16xf32>
    %c0_2 = arith.constant 0 : index
    %c0_3 = arith.constant 0 : index
    %1 = vector.load %arg3[%c0_2, %c0_3] : memref<8x1xf32, #tpu.memory_space<vmem>>, vector<8x1xf32>
    %2 = tpu.iota {dimensions = array<i32: 2>} : vector<1x1x16xi32>
    %c1_i32 = arith.constant 1 : i32
    %3 = tpu.dynamic_rotate %0 by %c1_i32 dim 2 : vector<1x4x16xf32>, i32 -> vector<1x4x16xf32>
    %c-1_i32 = arith.constant -1 : i32
    %4 = vector.broadcast %c-1_i32 : i32 to vector<1x1x16xi32>
    %5 = arith.addi %2, %4 : vector<1x1x16xi32>
    %c0_i32 = arith.constant 0 : i32
    %6 = vector.broadcast %c0_i32 : i32 to vector<1x1x16xi32>
    %7 = arith.cmpi sge, %5, %6 : vector<1x1x16xi32>
    %c-1_i32_4 = arith.constant -1 : i32
    %8 = vector.broadcast %c-1_i32_4 : i32 to vector<1x1x16xi32>
    %9 = arith.addi %2, %8 : vector<1x1x16xi32>
    %c16_i32 = arith.constant 16 : i32
    %10 = vector.broadcast %c16_i32 : i32 to vector<1x1x16xi32>
    %11 = arith.cmpi slt, %9, %10 : vector<1x1x16xi32>
    %12 = arith.andi %7, %11 : vector<1x1x16xi1>
    %cst = arith.constant 0.000000e+00 : f32
    %13 = vector.shape_cast %12 : vector<1x1x16xi1> to vector<1x1x16xi1>
    %14 = vector.broadcast %13 : vector<1x1x16xi1> to vector<1x4x16xi1>
    %15 = vector.broadcast %cst : f32 to vector<1x4x16xf32>
    %16 = arith.select %14, %3, %15 : vector<1x4x16xi1>, vector<1x4x16xf32>
    %c0_5 = arith.constant 0 : index
    %c0_6 = arith.constant 0 : index
    %c0_7 = arith.constant 0 : index
    %17 = vector.load %arg2[%c0_5, %c0_6, %c0_7] : memref<3x8x4xf32, #tpu.memory_space<vmem>>, vector<1x8x4xf32>
    %18 = vector.shape_cast %17 : vector<1x8x4xf32> to vector<8x4xf32>
    %19 = vector.shape_cast %16 : vector<1x4x16xf32> to vector<4x16xf32>
    %cst_8 = arith.constant dense<0.000000e+00> : vector<8x16xf32>
    %20 = tpu.matmul %18, %19, %cst_8 {dimension_numbers = #tpu.dot_dimension_numbers<[1], [0], [0], [1], [0, 0, 1, 1], [], []>} : vector<8x4xf32>, vector<4x16xf32>, vector<8x16xf32> -> vector<8x16xf32>
    %c1 = arith.constant 1 : index
    %c0_9 = arith.constant 0 : index
    %c0_10 = arith.constant 0 : index
    %21 = vector.load %arg2[%c1, %c0_9, %c0_10] : memref<3x8x4xf32, #tpu.memory_space<vmem>>, vector<1x8x4xf32>
    %22 = vector.shape_cast %21 : vector<1x8x4xf32> to vector<8x4xf32>
    %23 = vector.shape_cast %0 : vector<1x4x16xf32> to vector<4x16xf32>
    %cst_11 = arith.constant dense<0.000000e+00> : vector<8x16xf32>
    %24 = tpu.matmul %22, %23, %cst_11 {dimension_numbers = #tpu.dot_dimension_numbers<[1], [0], [0], [1], [0, 0, 1, 1], [], []>} : vector<8x4xf32>, vector<4x16xf32>, vector<8x16xf32> -> vector<8x16xf32>
    %25 = arith.addf %20, %24 : vector<8x16xf32>
    %c15_i32 = arith.constant 15 : i32
    %26 = tpu.dynamic_rotate %0 by %c15_i32 dim 2 : vector<1x4x16xf32>, i32 -> vector<1x4x16xf32>
    %c1_i32_12 = arith.constant 1 : i32
    %27 = vector.broadcast %c1_i32_12 : i32 to vector<1x1x16xi32>
    %28 = arith.addi %2, %27 : vector<1x1x16xi32>
    %c0_i32_13 = arith.constant 0 : i32
    %29 = vector.broadcast %c0_i32_13 : i32 to vector<1x1x16xi32>
    %30 = arith.cmpi sge, %28, %29 : vector<1x1x16xi32>
    %c1_i32_14 = arith.constant 1 : i32
    %31 = vector.broadcast %c1_i32_14 : i32 to vector<1x1x16xi32>
    %32 = arith.addi %2, %31 : vector<1x1x16xi32>
    %c16_i32_15 = arith.constant 16 : i32
    %33 = vector.broadcast %c16_i32_15 : i32 to vector<1x1x16xi32>
    %34 = arith.cmpi slt, %32, %33 : vector<1x1x16xi32>
    %35 = arith.andi %30, %34 : vector<1x1x16xi1>
    %cst_16 = arith.constant 0.000000e+00 : f32
    %36 = vector.shape_cast %35 : vector<1x1x16xi1> to vector<1x1x16xi1>
    %37 = vector.broadcast %36 : vector<1x1x16xi1> to vector<1x4x16xi1>
    %38 = vector.broadcast %cst_16 : f32 to vector<1x4x16xf32>
    %39 = arith.select %37, %26, %38 : vector<1x4x16xi1>, vector<1x4x16xf32>
    %c2 = arith.constant 2 : index
    %c0_17 = arith.constant 0 : index
    %c0_18 = arith.constant 0 : index
    %40 = vector.load %arg2[%c2, %c0_17, %c0_18] : memref<3x8x4xf32, #tpu.memory_space<vmem>>, vector<1x8x4xf32>
    %41 = vector.shape_cast %40 : vector<1x8x4xf32> to vector<8x4xf32>
    %42 = vector.shape_cast %39 : vector<1x4x16xf32> to vector<4x16xf32>
    %cst_19 = arith.constant dense<0.000000e+00> : vector<8x16xf32>
    %43 = tpu.matmul %41, %42, %cst_19 {dimension_numbers = #tpu.dot_dimension_numbers<[1], [0], [0], [1], [0, 0, 1, 1], [], []>} : vector<8x4xf32>, vector<4x16xf32>, vector<8x16xf32> -> vector<8x16xf32>
    %44 = arith.addf %25, %43 : vector<8x16xf32>
    %45 = vector.broadcast %1 : vector<8x1xf32> to vector<8x16xf32>
    %46 = arith.addf %44, %45 : vector<8x16xf32>
    %c0_20 = arith.constant 0 : index
    %c0_21 = arith.constant 0 : index
    %c0_22 = arith.constant 0 : index
    %47 = vector.load %arg4[%c0_20, %c0_21, %c0_22] : memref<1x8x16xf32, #tpu.memory_space<vmem>>, vector<1x8x16xf32>
    %48 = vector.shape_cast %47 : vector<1x8x16xf32> to vector<8x16xf32>
    %49 = vector.shape_cast %46 : vector<8x16xf32> to vector<1x8x16xf32>
    tpu.vector_store %arg4[%c0_20, %c0_21, %c0_22], %49 {strides = array<i32>} : memref<1x8x16xf32, #tpu.memory_space<vmem>>, vector<1x8x16xf32>,
    return
  }
  func.func @transform_0(%arg0: i32) -> (i32, i32, i32) {
    %c0_i32 = arith.constant 0 : i32
    %c0_i32_0 = arith.constant 0 : i32
    %c0_i32_1 = arith.constant 0 : i32
    return %arg0, %c0_i32, %c0_i32_0 : i32, i32, i32
  }
  func.func @transform_1(%arg0: i32) -> (i32, i32, i32) {
    %c0_i32 = arith.constant 0 : i32
    %c0_i32_0 = arith.constant 0 : i32
    %c0_i32_1 = arith.constant 0 : i32
    %c0_i32_2 = arith.constant 0 : i32
    return %c0_i32, %c0_i32_0, %c0_i32_1 : i32, i32, i32
  }
  func.func @transform_2(%arg0: i32) -> (i32, i32) {
    %c0_i32 = arith.constant 0 : i32
    %c0_i32_0 = arith.constant 0 : i32
    %c0_i32_1 = arith.constant 0 : i32
    return %c0_i32, %c0_i32_0 : i32, i32
  }
  func.func @transform_3(%arg0: i32) -> (i32, i32, i32) {
    %c0_i32 = arith.constant 0 : i32
    %c0_i32_0 = arith.constant 0 : i32
    %c0_i32_1 = arith.constant 0 : i32
    return %arg0, %c0_i32, %c0_i32_0 : i32, i32, i32
  }
}

</mosaic_0001>

<llo_original>
// kernel: tpu_custom_call.1
$region0: #{tpu_custom_call.1}
  #allocation0 [shape = 'u32[]', space=smem, size = 0x4, offset = 0x4, fixed_abs, tag = 'smem constant byte address 0x4 - core index']
  #allocation1 [shape = 'u32[144,128]{1,0:T(1,128)}', space=vmem, size = 0x12000, scoped, tag = 'internal scratch']
  %s0 = inlined_call_operand.vmem [shape: f32[2,4,16], index: 0, kind: input, shape index: {}]
  %s1 = inlined_call_operand.vmem [shape: f32[3,8,4], index: 1, kind: input, shape index: {}]
  %s2 = inlined_call_operand.vmem [shape: f32[8,1], index: 2, kind: input, shape index: {}]
  %s3 = inlined_call_operand.hbm [shape: f32[2,8,16], index: 3, kind: output, shape index: {}]
  %s4 = sld [smem:[#allocation0]]
  $region45: #{tpu_custom_call.1} parent=0
    _
  %s6 = ssub.s32 1, %s4
  %s7 = scalar_select 0, %s6, %s4
  $region1: #{tpu_custom_call.1} parent=0
    #allocation2 [shape = 'u8[8192]{0}', space=vmem, size = 0x2000, scoped, tag = 'output window, operand 0']
    #allocation3 [shape = 's32[2]{0}', space=sflag, size = 0x8, scoped, tag = 'scoped memory for tpu_custom_call.1']
    %8 = vsyncpa [#allocation3], 0
    %s9 = scalar_lea.sflag [#allocation3], 1
    %10 = vsyncpa %s9, 0
    loop: start=0, step=1, limit=4
    $region2: #{tpu_custom_call.1} parent=1 // loop_pre_header
      _
    $region3: #{tpu_custom_call.1} parent=1 // loop_header
      %s12 = sphi 0, %s16
      %p13 = scmp.ge.s32.totalorder %s12, 4
      %s22 = sphi 0, %s24
      %s25 = sphi 0, %s22
      %s26 = sphi 0, %s25
      %s42 = sphi 0, %s26
      %s46 = sphi 0, %s46
      %s48 = sphi 0, %s46
      %s49 = sphi 0, %s48
      %s63 = sphi 0, %s49
      %s67 = sphi 0, %s67
      %s69 = sphi 0, %s67
      %s70 = sphi 0, %s69
      %s84 = sphi 0, %s70
      %s90 = sphi 0, %s92
      %s93 = sphi 0, %s90
      %s94 = sphi 0, %s93
      %s110 = sphi 0, %s94
    $region4: #{tpu_custom_call.1} parent=1 // loop_header_branch
      %15 = sbr.rel (%p13) target = $region8
    $region5: #{tpu_custom_call.1} parent=1 // loop_body
      %s17 = ssub.s32 %s12, 1
      %s18 = ssub.s32 %s12, 2
      %s19 = sadd.s32 %s12, 1
      %s20 = ssub.s32 %s12, %s19
      %p21 = scmp.eq.s32.totalorder %s20, 0
      %s23 = sadd.s32 %s22, 1
      %s24 = scalar_select %p21, %s22, %s23
      %p27 = pneg %p21
      %p28 = scmp.eq.s32.totalorder %s12, 1
      %p29 = por %p27, %p28
      %p30 = scmp.ne.s32.totalorder %s22, %s25
      %p31 = scmp.eq.s32.totalorder %s12, 0
      %p32 = por %p30, %p31
      %p33 = scmp.ne.s32.totalorder %s22, %s25
      %p34 = scmp.eq.s32.totalorder %s17, 1
      %p35 = por %p33, %p34
      %p36 = scmp.ne.s32.totalorder %s25, %s26
      %p37 = scmp.eq.s32.totalorder %s17, 0
      %p38 = por %p36, %p37
      %p39 = scmp.ne.s32.totalorder %s25, %s26
      %p40 = scmp.eq.s32.totalorder %s18, 1
      %p41 = por %p39, %p40
      %p43 = scmp.ne.s32.totalorder %s26, %s42
      %p44 = scmp.eq.s32.totalorder %s18, 0
      %p45 = por %p43, %p44
      %s47 = sadd.s32 %s46, 1
      %p50 = scmp.eq.s32.totalorder %s12, 1
      %p51 = scmp.ne.s32.totalorder %s46, %s48
      %p52 = scmp.eq.s32.totalorder %s12, 0
      %p53 = por %p51, %p52
      %p54 = scmp.ne.s32.totalorder %s46, %s48
      %p55 = scmp.eq.s32.totalorder %s17, 1
      %p56 = por %p54, %p55
      %p57 = scmp.ne.s32.totalorder %s48, %s49
      %p58 = scmp.eq.s32.totalorder %s17, 0
      %p59 = por %p57, %p58
      %p60 = scmp.ne.s32.totalorder %s48, %s49
      %p61 = scmp.eq.s32.totalorder %s18, 1
      %p62 = por %p60, %p61
      %p64 = scmp.ne.s32.totalorder %s49, %s63
      %p65 = scmp.eq.s32.totalorder %s18, 0
      %p66 = por %p64, %p65
      %s68 = sadd.s32 %s67, 1
      %p71 = scmp.eq.s32.totalorder %s12, 1
      %p72 = scmp.ne.s32.totalorder %s67, %s69
      %p73 = scmp.eq.s32.totalorder %s12, 0
      %p74 = por %p72, %p73
      %p75 = scmp.ne.s32.totalorder %s67, %s69
      %p76 = scmp.eq.s32.totalorder %s17, 1
      %p77 = por %p75, %p76
      %p78 = scmp.ne.s32.totalorder %s69, %s70
      %p79 = scmp.eq.s32.totalorder %s17, 0
      %p80 = por %p78, %p79
      %p81 = scmp.ne.s32.totalorder %s69, %s70
      %p82 = scmp.eq.s32.totalorder %s18, 1
      %p83 = por %p81, %p82
      %p85 = scmp.ne.s32.totalorder %s70, %s84
      %p86 = scmp.eq.s32.totalorder %s18, 0
      %p87 = por %p85, %p86
      %s88 = ssub.s32 %s12, %s19
      %p89 = scmp.eq.s32.totalorder %s88, 0
      %s91 = sadd.s32 %s90, 1
      %s92 = scalar_select %p89, %s90, %s91
      %p95 = pneg %p89
      %p96 = scmp.eq.s32.totalorder %s12, 1
      %p97 = por %p95, %p96
      %p98 = scmp.ne.s32.totalorder %s90, %s93
      %p99 = scmp.eq.s32.totalorder %s12, 0
      %p100 = por %p98, %p99
      %p101 = scmp.ne.s32.totalorder %s90, %s93
      %p102 = scmp.eq.s32.totalorder %s17, 1
      %p103 = por %p101, %p102
      %p104 = scmp.ne.s32.totalorder %s93, %s94
      %p105 = scmp.eq.s32.totalorder %s17, 0
      %p106 = por %p104, %p105
      %p107 = scmp.ne.s32.totalorder %s93, %s94
      %p108 = scmp.eq.s32.totalorder %s18, 1
      %p109 = por %p107, %p108
      %p111 = scmp.ne.s32.totalorder %s94, %s110
      %p112 = scmp.eq.s32.totalorder %s18, 0
      %p113 = por %p111, %p112
      %p114 = scmp.le.s32.totalorder 1, %s12
      %p115 = scmp.lt.s32.totalorder %s12, 3
      %p116 = pnand %p114, %p115
      %p117 = pneg %p116
      // Predicated region
      $region9: #{tpu_custom_call.1} parent=5 // pred_check
        _
      $region10: #{tpu_custom_call.1} parent=5 // pred_check_branch
        %119 = sbr.rel (%p116) target = $region12
      $region11: #{tpu_custom_call.1} parent=5 // pred_region
        %s120 = ssub.s32 %s12, 1
        // Predicated region
        $region13: #{tpu_custom_call.1} parent=11 // pred_check
          %p121 = pneg %p59
        $region14: #{tpu_custom_call.1} parent=11 // pred_check_branch
          %123 = sbr.rel (%p121) target = $region16
        $region15: #{tpu_custom_call.1} parent=11 // pred_region
          _
        $region16: #{tpu_custom_call.1} parent=11 // pred_fallthru
          _
        // Predicated region
        $region17: #{tpu_custom_call.1} parent=11 // pred_check
          %p124 = pneg %p80
        $region18: #{tpu_custom_call.1} parent=11 // pred_check_branch
          %126 = sbr.rel (%p124) target = $region20
        $region19: #{tpu_custom_call.1} parent=11 // pred_region
          _
        $region20: #{tpu_custom_call.1} parent=11 // pred_fallthru
          _
      $region12: #{tpu_custom_call.1} parent=5 // pred_fallthru
        _
      %p127 = scmp.lt.s32.totalorder %s12, 2
      // Predicated region
      $region21: #{tpu_custom_call.1} parent=5 // pred_check
        %p128 = pneg %p127
      $region22: #{tpu_custom_call.1} parent=5 // pred_check_branch
        %130 = sbr.rel (%p128) target = $region24
      $region23: #{tpu_custom_call.1} parent=5 // pred_region
        // Predicated region
        $region25: #{tpu_custom_call.1} parent=23 // pred_check
          %p131 = pneg %p32
        $region26: #{tpu_custom_call.1} parent=23 // pred_check_branch
          %133 = sbr.rel (%p131) target = $region28
        $region27: #{tpu_custom_call.1} parent=23 // pred_region
          %p134 = scmp.lt.s32.totalorder %s12, 1
          %s135 = scalar_select %p134, %s12, 1
          %s136 = smul.addr %s135, 4
          %s137 = scalar_lea.vmem %s0, %s136
        $region28: #{tpu_custom_call.1} parent=23 // pred_fallthru
          _
      $region24: #{tpu_custom_call.1} parent=5 // pred_fallthru
        _
      %p138 = scmp.le.s32.totalorder 1, %s12
      %p139 = scmp.lt.s32.totalorder %s12, 3
      %p140 = pnand %p138, %p139
      %p141 = pneg %p140
      // Predicated region
      $region29: #{tpu_custom_call.1} parent=5 // pred_check
        _
      $region30: #{tpu_custom_call.1} parent=5 // pred_check_branch
        %143 = sbr.rel (%p140) target = $region32
      $region31: #{tpu_custom_call.1} parent=5 // pred_region
        %s144 = ssub.s32 %s12, 1
        %p145 = scmp.lt.s32.totalorder %s17, 1
        %s146 = scalar_select %p145, %s17, 1
        %s147 = smul.addr %s146, 4
        %s148 = scalar_lea.vmem %s0, %s147
        %p149 = pneg %p38
        %p150 = pneg %p35
        %p151 = pneg %p59
        %p152 = pneg %p56
        %p153 = pneg %p80
        %p154 = pneg %p77
        %p155 = pneg %p106
        %p156 = pneg %p103
        %s157 = sand.u32 %s93, 1
        %s158 = scalar_lea.sflag [#allocation3], %s157
        %s159 = sand.u32 %s93, 1
        %s160 = smul.addr %s159, 8
        %s161 = scalar_lea.vmem [#allocation2], %s160
        %p162 = scmp.lt.s32.totalorder %s17, 1
        %s163 = scalar_select %p162, %s17, 1
        %s164 = smul.addr %s163, 4
        %s165 = scalar_lea.vmem %s0, %s164
        %v166 = vld [vmem:[%s165] sm:$0xf]
        %v167 = vld [vmem:[%s2] sm:$0xff]
        %v168 = vlaneseq
        %v169 = vand.u32 %v168, 127
        %vm170 = vcmask 1047680
        %171 = vrot.lane.b32.xlu0 %v166, 16
        %v172 = vpop.permute.xlu0 %171
        %v173 = vsel %vm170, %v172, %v166
        %174 = vrot.lane.b32.xlu0 %v173, 16
        %v175 = vpop.permute.xlu0 %174
        %v176 = vsel %vm170, %v175, %v166
        %v177 = vadd.s32 %v169, 4294967295
        %vm178 = vcmp.ge.s32.totalorder %v177, 0
        %vm179 = vcmp.lt.s32.totalorder %v177, 16
        %vm180 = vmand %vm178, %vm179
        %v181 = vsel %vm180, 1, 0
        %vm182 = vcmp.eq.s32.totalorder %v181, 1
        %184 = vrot.lane.b32.xlu0 %v176, 113
        %v185 = vpop.permute.xlu0 %184
        %v187 = vsel %vm182, %v185, 0.0
        %v188 = vld [vmem:[%s1] sm:$0xff]
        %s189 = scalar_lea.vmem %s1, 8
        %v190 = vld [vmem:[%s189] sm:$0xff]
        %vm191 = vcmask 31744
        %v193 = vsel %vm191, %v190, 0
        %vm195 = vcmask 1043456
        %v197 = vsel %vm195, %v166, 0
        %199 = vmatprep.subr.mxu0 0.0
        %200 = vmatpush1.msra.mxu0 %v197
        %201 = vmatprep.subr.mxu0 0.0
        %202 = vmatpush1.msra.mxu0 0.0
        %203 = vmatprep.subr.mxu0 0.0
        %204 = vmatpush1.msra.mxu0 0.0
        %205 = vmatprep.subr.mxu0 0.0
        %206 = vmatpush1.msra.mxu0 0.0
        %207 = vmatprep.subr.mxu0 0.0
        %208 = vmatpush1.msra.mxu0 0.0
        %209 = vmatprep.subr.mxu0 0.0
        %210 = vmatpush1.msra.mxu0 0.0
        %211 = vmatprep.subr.mxu0 0.0
        %212 = vmatpush1.msra.mxu0 0.0
        %213 = vmatprep.subr.mxu0 0.0
        %214 = vmatpush1.msra.mxu0 0.0
        %215 = vmatprep.subr.mxu0 0.0
        %216 = vmatpush1.msra.mxu0 0.0
        %217 = vmatprep.subr.mxu0 0.0
        %218 = vmatpush1.msra.mxu0 0.0
        %219 = vmatprep.subr.mxu0 0.0
        %220 = vmatpush1.msra.mxu0 0.0
        %221 = vmatprep.subr.mxu0 0.0
        %222 = vmatpush1.msra.mxu0 0.0
        %223 = vmatprep.subr.mxu0 0.0
        %224 = vmatpush1.msra.mxu0 0.0
        %225 = vmatprep.subr.mxu0 0.0
        %226 = vmatpush1.msra.mxu0 0.0
        %227 = vmatprep.subr.mxu0 0.0
        %228 = vmatpush1.msra.mxu0 0.0
        %229 = vmatprep.subr.mxu0 0.0
        %230 = vmatpush1.msra.mxu0 0.0
        %231 = vmatprep.subr.mxu0 0.0
        %232 = vmatpush1.msra.mxu0 0.0
        %233 = vmatprep.subr.mxu0 0.0
        %234 = vmatpush1.msra.mxu0 0.0
        %235 = vmatprep.subr.mxu0 0.0
        %236 = vmatpush1.msra.mxu0 0.0
        %237 = vmatprep.subr.mxu0 0.0
        %238 = vmatpush1.msra.mxu0 0.0
        %239 = vmatprep.subr.mxu0 0.0
        %240 = vmatpush1.msra.mxu0 0.0
        %241 = vmatprep.subr.mxu0 0.0
        %242 = vmatpush1.msra.mxu0 0.0
        %243 = vmatprep.subr.mxu0 0.0
        %244 = vmatpush1.msra.mxu0 0.0
        %245 = vmatprep.subr.mxu0 0.0
        %246 = vmatpush1.msra.mxu0 0.0
        %247 = vmatprep.subr.mxu0 0.0
        %248 = vmatpush1.msra.mxu0 0.0
        %249 = vmatprep.subr.mxu0 0.0
        %250 = vmatpush1.msra.mxu0 0.0
        %251 = vmatprep.subr.mxu0 0.0
        %252 = vmatpush1.msra.mxu0 0.0
        %253 = vmatprep.subr.mxu0 0.0
        %254 = vmatpush1.msra.mxu0 0.0
        %255 = vmatprep.subr.mxu0 0.0
        %256 = vmatpush1.msra.mxu0 0.0
        %257 = vmatprep.subr.mxu0 0.0
        %258 = vmatpush1.msra.mxu0 0.0
        %259 = vmatprep.subr.mxu0 0.0
        %260 = vmatpush1.msra.mxu0 0.0
        %261 = vmatprep.subr.mxu0 0.0
        %262 = vmatpush1.msra.mxu0 0.0
        %263 = vmatprep.mubr.f32.mxu0 0.0
        %264 = vmatmul.mubr.f32.gmra.mrb[0].mxu0 %v193
        %v265 = vpop.f32.mrb[0].mxu0
        %v266 = vadd.f32 0.0, %v265
        %v267 = vpop.f32.mrb[0].mxu0
        %268 = vdwg.mxu0
        %v270 = vsel %vm191, %v188, 0
        %v273 = vsel %vm195, %v187, 0
        %275 = vmatprep.subr.mxu0 0.0
        %276 = vmatpush1.msra.mxu0 %v273
        %277 = vmatprep.subr.mxu0 0.0
        %278 = vmatpush1.msra.mxu0 0.0
        %279 = vmatprep.subr.mxu0 0.0
        %280 = vmatpush1.msra.mxu0 0.0
        %281 = vmatprep.subr.mxu0 0.0
        %282 = vmatpush1.msra.mxu0 0.0
        %283 = vmatprep.subr.mxu0 0.0
        %284 = vmatpush1.msra.mxu0 0.0
        %285 = vmatprep.subr.mxu0 0.0
        %286 = vmatpush1.msra.mxu0 0.0
        %287 = vmatprep.subr.mxu0 0.0
        %288 = vmatpush1.msra.mxu0 0.0
        %289 = vmatprep.subr.mxu0 0.0
        %290 = vmatpush1.msra.mxu0 0.0
        %291 = vmatprep.subr.mxu0 0.0
        %292 = vmatpush1.msra.mxu0 0.0
        %293 = vmatprep.subr.mxu0 0.0
        %294 = vmatpush1.msra.mxu0 0.0
        %295 = vmatprep.subr.mxu0 0.0
        %296 = vmatpush1.msra.mxu0 0.0
        %297 = vmatprep.subr.mxu0 0.0
        %298 = vmatpush1.msra.mxu0 0.0
        %299 = vmatprep.subr.mxu0 0.0
        %300 = vmatpush1.msra.mxu0 0.0
        %301 = vmatprep.subr.mxu0 0.0
        %302 = vmatpush1.msra.mxu0 0.0
        %303 = vmatprep.subr.mxu0 0.0
        %304 = vmatpush1.msra.mxu0 0.0
        %305 = vmatprep.subr.mxu0 0.0
        %306 = vmatpush1.msra.mxu0 0.0
        %307 = vmatprep.subr.mxu0 0.0
        %308 = vmatpush1.msra.mxu0 0.0
        %309 = vmatprep.subr.mxu0 0.0
        %310 = vmatpush1.msra.mxu0 0.0
        %311 = vmatprep.subr.mxu0 0.0
        %312 = vmatpush1.msra.mxu0 0.0
        %313 = vmatprep.subr.mxu0 0.0
        %314 = vmatpush1.msra.mxu0 0.0
        %315 = vmatprep.subr.mxu0 0.0
        %316 = vmatpush1.msra.mxu0 0.0
        %317 = vmatprep.subr.mxu0 0.0
        %318 = vmatpush1.msra.mxu0 0.0
        %319 = vmatprep.subr.mxu0 0.0
        %320 = vmatpush1.msra.mxu0 0.0
        %321 = vmatprep.subr.mxu0 0.0
        %322 = vmatpush1.msra.mxu0 0.0
        %323 = vmatprep.subr.mxu0 0.0
        %324 = vmatpush1.msra.mxu0 0.0
        %325 = vmatprep.subr.mxu0 0.0
        %326 = vmatpush1.msra.mxu0 0.0
        %327 = vmatprep.subr.mxu0 0.0
        %328 = vmatpush1.msra.mxu0 0.0
        %329 = vmatprep.subr.mxu0 0.0
        %330 = vmatpush1.msra.mxu0 0.0
        %331 = vmatprep.subr.mxu0 0.0
        %332 = vmatpush1.msra.mxu0 0.0
        %333 = vmatprep.subr.mxu0 0.0
        %334 = vmatpush1.msra.mxu0 0.0
        %335 = vmatprep.subr.mxu0 0.0
        %336 = vmatpush1.msra.mxu0 0.0
        %337 = vmatprep.subr.mxu0 0.0
        %338 = vmatpush1.msra.mxu0 0.0
        %339 = vmatprep.mubr.f32.mxu0 0.0
        %340 = vmatmul.mubr.f32.gmra.mrb[0].mxu0 %v270
        %v341 = vpop.f32.mrb[0].mxu0
        %v342 = vadd.f32 %v266, %v341
        %v343 = vpop.f32.mrb[0].mxu0
        %344 = vdwg.mxu0
        %v345 = vadd.s32 %v169, 1
        %vm346 = vcmp.ge.s32.totalorder %v345, 0
        %vm347 = vcmp.lt.s32.totalorder %v345, 16
        %vm348 = vmand %vm346, %vm347
        %v349 = vsel %vm348, 1, 0
        %vm350 = vcmp.eq.s32.totalorder %v349, 1
        %351 = vrot.lane.b32.xlu0 %v176, 127
        %v352 = vpop.permute.xlu0 %351
        %v354 = vsel %vm350, %v352, 0.0
        %s355 = scalar_lea.vmem %s1, 16
        %v356 = vld [vmem:[%s355] sm:$0xff]
        %v358 = vsel %vm191, %v356, 0
        %v361 = vsel %vm195, %v354, 0
        %363 = vmatprep.subr.mxu0 0.0
        %364 = vmatpush1.msra.mxu0 %v361
        %365 = vmatprep.subr.mxu0 0.0
        %366 = vmatpush1.msra.mxu0 0.0
        %367 = vmatprep.subr.mxu0 0.0
        %368 = vmatpush1.msra.mxu0 0.0
        %369 = vmatprep.subr.mxu0 0.0
        %370 = vmatpush1.msra.mxu0 0.0
        %371 = vmatprep.subr.mxu0 0.0
        %372 = vmatpush1.msra.mxu0 0.0
        %373 = vmatprep.subr.mxu0 0.0
        %374 = vmatpush1.msra.mxu0 0.0
        %375 = vmatprep.subr.mxu0 0.0
        %376 = vmatpush1.msra.mxu0 0.0
        %377 = vmatprep.subr.mxu0 0.0
        %378 = vmatpush1.msra.mxu0 0.0
        %379 = vmatprep.subr.mxu0 0.0
        %380 = vmatpush1.msra.mxu0 0.0
        %381 = vmatprep.subr.mxu0 0.0
        %382 = vmatpush1.msra.mxu0 0.0
        %383 = vmatprep.subr.mxu0 0.0
        %384 = vmatpush1.msra.mxu0 0.0
        %385 = vmatprep.subr.mxu0 0.0
        %386 = vmatpush1.msra.mxu0 0.0
        %387 = vmatprep.subr.mxu0 0.0
        %388 = vmatpush1.msra.mxu0 0.0
        %389 = vmatprep.subr.mxu0 0.0
        %390 = vmatpush1.msra.mxu0 0.0
        %391 = vmatprep.subr.mxu0 0.0
        %392 = vmatpush1.msra.mxu0 0.0
        %393 = vmatprep.subr.mxu0 0.0
        %394 = vmatpush1.msra.mxu0 0.0
        %395 = vmatprep.subr.mxu0 0.0
        %396 = vmatpush1.msra.mxu0 0.0
        %397 = vmatprep.subr.mxu0 0.0
        %398 = vmatpush1.msra.mxu0 0.0
        %399 = vmatprep.subr.mxu0 0.0
        %400 = vmatpush1.msra.mxu0 0.0
        %401 = vmatprep.subr.mxu0 0.0
        %402 = vmatpush1.msra.mxu0 0.0
        %403 = vmatprep.subr.mxu0 0.0
        %404 = vmatpush1.msra.mxu0 0.0
        %405 = vmatprep.subr.mxu0 0.0
        %406 = vmatpush1.msra.mxu0 0.0
        %407 = vmatprep.subr.mxu0 0.0
        %408 = vmatpush1.msra.mxu0 0.0
        %409 = vmatprep.subr.mxu0 0.0
        %410 = vmatpush1.msra.mxu0 0.0
        %411 = vmatprep.subr.mxu0 0.0
        %412 = vmatpush1.msra.mxu0 0.0
        %413 = vmatprep.subr.mxu0 0.0
        %414 = vmatpush1.msra.mxu0 0.0
        %415 = vmatprep.subr.mxu0 0.0
        %416 = vmatpush1.msra.mxu0 0.0
        %417 = vmatprep.subr.mxu0 0.0
        %418 = vmatpush1.msra.mxu0 0.0
        %419 = vmatprep.subr.mxu0 0.0
        %420 = vmatpush1.msra.mxu0 0.0
        %421 = vmatprep.subr.mxu0 0.0
        %422 = vmatpush1.msra.mxu0 0.0
        %423 = vmatprep.subr.mxu0 0.0
        %424 = vmatpush1.msra.mxu0 0.0
        %425 = vmatprep.subr.mxu0 0.0
        %426 = vmatpush1.msra.mxu0 0.0
        %427 = vmatprep.mubr.f32.mxu0 0.0
        %428 = vmatmul.mubr.f32.gmra.mrb[0].mxu0 %v358
        %v429 = vpop.f32.mrb[0].mxu0
        %v430 = vadd.f32 0.0, %v429
        %v431 = vpop.f32.mrb[0].mxu0
        %432 = vdwg.mxu0
        %v433 = vadd.f32 %v342, %v430
        %435 = vset.pattern.permute.xlu0 0
        %436 = vperm.xlu0 %435, %v167
        %v437 = vpop.permute.xlu0 %436
        %v439 = vadd.f32 %v433, %v437
        %vm440 = vcmask 130048
        %441 = vst.msk [vmem:[%s161] sm:$0xff] %vm440, %v439
        %s442 = sand.u32 %s93, 1
        %s443 = scalar_lea.sflag [#allocation3], %s442
        %s444 = sand.u32 %s93, 1
        %s445 = smul.addr %s444, 8
        %s446 = scalar_lea.vmem [#allocation2], %s445
        // Predicated region
        $region33: #{tpu_custom_call.1} parent=31 // pred_check
          %p447 = pneg %p103
        $region34: #{tpu_custom_call.1} parent=31 // pred_check_branch
          %449 = sbr.rel (%p447) target = $region36
        $region35: #{tpu_custom_call.1} parent=31 // pred_region
          %s451 = ssub.s32 128, 128
          %452 = vsyncadd %s443, %s451
          %s453 = smul.addr %s17, 128
          %s454 = scalar_lea.hbm %s3, %s453
          %s456 = sshll.u32 %s446, 4
          %s457 = int_to_ptr.vmem [resolvable:$true] %s456
          %459 = dma.vmem_to_hbm [thread:$0]  %s457, 128, %s454, %s443
        $region36: #{tpu_custom_call.1} parent=31 // pred_fallthru
          _
      $region32: #{tpu_custom_call.1} parent=5 // pred_fallthru
        _
      %p460 = scmp.le.s32.totalorder 2, %s12
      // Predicated region
      $region37: #{tpu_custom_call.1} parent=5 // pred_check
        %p461 = pneg %p460
      $region38: #{tpu_custom_call.1} parent=5 // pred_check_branch
        %463 = sbr.rel (%p461) target = $region40
      $region39: #{tpu_custom_call.1} parent=5 // pred_region
        %s464 = ssub.s32 %s12, 2
        // Predicated region
        $region41: #{tpu_custom_call.1} parent=39 // pred_check
          %p465 = pneg %p109
        $region42: #{tpu_custom_call.1} parent=39 // pred_check_branch
          %467 = sbr.rel (%p465) target = $region44
        $region43: #{tpu_custom_call.1} parent=39 // pred_region
          %s468 = sand.u32 %s94, 1
          %s469 = scalar_lea.sflag [#allocation3], %s468
          %s470 = sand.u32 %s94, 1
          %s471 = smul.addr %s470, 8
          %s472 = scalar_lea.vmem [#allocation2], %s471
          %473 = dma.done %s469, 128
        $region44: #{tpu_custom_call.1} parent=39 // pred_fallthru
          _
      $region40: #{tpu_custom_call.1} parent=5 // pred_fallthru
        _
    $region6: #{tpu_custom_call.1} parent=1 // loop_footer
      %s16 = sadd.s32 1, %s12
    $region7: #{tpu_custom_call.1} parent=1 // loop_footer_branch
      %11 = sbr.rel target = $region3
    $region8: #{tpu_custom_call.1} parent=1 // loop_exit
      _
    %474 = vsyncpa [#allocation3], 1
    %s475 = scalar_lea.sflag [#allocation3], 1
    %476 = vsyncpa %s475, 1

</llo_original>
